<compile_context>
chip_gen: v7x
topology: tpu7x:2x2x1
jax: 0.10.0
libtpu: 0.0.40
codegen_flags: <defaults>
</compile_context>

<pallas_src>
import functools

import jax
import jax.numpy as jnp
from jax.experimental import pallas as pl
from jax.experimental.pallas import tpu as pltpu


def _edge_detect_kernel(x_ref, edge_ref, o_ref, *, W):
    # One image plane per sublane row; pixels flattened along lanes.
    x = x_ref[...].astype(jnp.float32)      # in-kernel cast; DMA stays native dtype
    L = x.shape[-1]

    # Edge-position flags decoded at (1, L); jnp.where broadcasts them across
    # the sublane (plane) axis -- no full-block int32 temporary.
    e = edge_ref[...]                        # (1, L) int32
    is_l = (e & 1) != 0                      # j == 0
    is_r = (e & 2) != 0                      # j == W - 1
    is_t = (e & 4) != 0                      # i == 0
    is_b = (e & 8) != 0                      # i == H - 1

    # --- SpatialGradient('diff'), replicate padding -------------------------
    nxt_w = pltpu.roll(x, L - 1, 1)          # x[i, j+1]  (wrap fixed by select)
    prv_w = pltpu.roll(x, 1, 1)              # x[i, j-1]
    nxt_h = pltpu.roll(x, L - W, 1)          # x[i+1, j]
    prv_h = pltpu.roll(x, W, 1)              # x[i-1, j]
    du = jnp.where(is_r, x, nxt_w) - jnp.where(is_l, x, prv_w)   # 2*dx
    dv = jnp.where(is_b, x, nxt_h) - jnp.where(is_t, x, prv_h)   # 2*dy
    mag = 0.5 * jnp.sqrt(du * du + dv * dv)  # 0.5 normalization hoisted

    # --- MaxPool2d(kernel=3, stride=1, padding=1), separable ----------------
    # Zero padding == -inf padding because mag >= 0.
    h = jnp.maximum(
        mag,
        jnp.maximum(jnp.where(is_r, 0.0, pltpu.roll(mag, L - 1, 1)),
                    jnp.where(is_l, 0.0, pltpu.roll(mag, 1, 1))))
    out = jnp.maximum(
        h,
        jnp.maximum(jnp.where(is_b, 0.0, pltpu.roll(h, L - W, 1)),
                    jnp.where(is_t, 0.0, pltpu.roll(h, W, 1))))
    o_ref[...] = out.astype(o_ref.dtype)


def _round_up(a, b):
    return -(-a // b) * b


def _vmem_capacity_bytes(default=64 * 1024 * 1024):
    """VMEM capacity per TensorCore; conservative default if the query fails."""
    try:
        cap = getattr(pltpu.get_tpu_info(), "vmem_capacity_bytes", None)
        if cap:
            return int(cap)
    except Exception:
        pass
    return default


def edge_detect(x, *, target_block_bytes=None, vmem_limit_bytes=None):
    """x: (B, C, H, W) float -> (B, C, H, W) in x.dtype."""
    B, C, H, W = x.shape
    P, L = B * C, H * W

    dtype = x.dtype
    if not jnp.issubdtype(dtype, jnp.floating):
        dtype = jnp.float32
        x = x.astype(dtype)
    itemsize = jnp.dtype(dtype).itemsize
    xf = x.reshape(P, L)                     # metadata-only reshape, no HBM pass

    # Edge bit flags per flattened pixel (shared by every plane), tiny (1, L).
    jj = jnp.tile(jnp.arange(W, dtype=jnp.int32), H)
    ii = jnp.repeat(jnp.arange(H, dtype=jnp.int32), W)
    edge = ((jj == 0) * 1 + (jj == W - 1) * 2 +
            (ii == 0) * 4 + (ii == H - 1) * 8).astype(jnp.int32).reshape(1, L)

    # --- Chip-aware tiling ---------------------------------------------------
    vmem_cap = _vmem_capacity_bytes()
    small_vmem = vmem_cap <= 64 * 1024 * 1024        # v7x-class (also 2 TCs/chip)
    if target_block_bytes is None:
        target_block_bytes = (2 if small_vmem else 6) * 1024 * 1024
    sub_mult = 8 * max(1, 4 // itemsize)             # f32: 8, bf16: 16, 8-bit: 32

    plane_bytes = L * itemsize
    tp_cap = max(1, target_block_bytes // plane_bytes)
    if tp_cap >= P:
        tp = P
        if small_vmem and P >= 2 * sub_mult:
            tp = min(P, _round_up(-(-P // 2), 8))    # keep both v7x TCs busy
    else:
        steps = -(-P // tp_cap)
        if steps > 1 and steps % 2:
            steps += 1                               # even split across 2 TCs
        tp = min(P, _round_up(-(-P // steps), sub_mult))

    # VMEM need: 2x(in) + 2x(out) pipeline buffers plus ~12 live full-block
    # f32 temporaries (x, 4 rolls, du/dv, mag + rolls, h + rolls, out).
    def vmem_need(tp_):
        io_blk = tp_ * L * itemsize
        f32_blk = tp_ * L * 4
        return 4 * io_blk + 12 * f32_blk + (1 << 20)

    budget = int(0.75 * vmem_cap)                    # ~48 MiB on v7x, ~96 MiB else
    while vmem_need(tp) > budget:
        if tp <= 8 or P <= 8:
            # TODO(synk): H-tile very large planes with a 2-row halo instead of
            # failing; a single minimum-size block of this image won't fit VMEM.
            raise NotImplementedError(
                f"edge_detect: a {H}x{W} plane ({plane_bytes >> 10} KiB) is too "
                f"large for plane-wise tiling (needs ~{vmem_need(tp) >> 20} MiB "
                f"VMEM, budget ~{budget >> 20} MiB).")
        tp = max(8, ((tp // 2) // 8) * 8)

    if vmem_limit_bytes is None:
        vmem_limit_bytes = int(min(budget,
                                   max(32 * 1024 * 1024,
                                       _round_up(vmem_need(tp), 1 << 20))))

    grid = (pl.cdiv(P, tp),)
    out = pl.pallas_call(
        functools.partial(_edge_detect_kernel, W=W),
        out_shape=jax.ShapeDtypeStruct((P, L), dtype),
        grid_spec=pltpu.PrefetchScalarGridSpec(
            num_scalar_prefetch=0,
            grid=grid,
            # NOTE: if an xprof trace shows exposed DMA on v7x, try
            # pipeline_mode=pl.Buffered(3) on the x spec (skip on v5e/v6e).
            in_specs=[pl.BlockSpec((tp, L), lambda g: (g, 0)),
                      pl.BlockSpec((1, L), lambda g: (0, 0))],
            out_specs=pl.BlockSpec((tp, L), lambda g: (g, 0)),
        ),
        compiler_params=pltpu.CompilerParams(
            dimension_semantics=("parallel",),
            vmem_limit_bytes=vmem_limit_bytes,
        ),
    )(xf, edge)
    return out.reshape(B, C, H, W)


def edge_detect_ref(x):
    """Pure-JAX reference for correctness checking."""
    x = x.astype(jnp.float32)
    xp = jnp.pad(x, ((0, 0), (0, 0), (1, 1), (1, 1)), mode="edge")
    dx = 0.5 * (xp[:, :, 1:-1, 2:] - xp[:, :, 1:-1, :-2])
    dy = 0.5 * (xp[:, :, 2:, 1:-1] - xp[:, :, :-2, 1:-1])
    mag = jnp.sqrt(dx * dx + dy * dy)
    H, W = x.shape[2], x.shape[3]
    mp = jnp.pad(mag, ((0, 0), (0, 0), (1, 1), (1, 1)),
                 constant_values=-jnp.inf)
    windows = jnp.stack(
        [mp[:, :, i:i + H, j:j + W] for i in range(3) for j in range(3)], 0)
    return windows.max(0)


if __name__ == "__main__":
    key = jax.random.PRNGKey(0)
    k1, k2, k3 = jax.random.split(key, 3)

    # Primary check: the spec's small shape.
    x = jax.random.normal(k1, (2, 4, 16, 16), dtype=jnp.float32)
    out = jax.block_until_ready(edge_detect(x))
    ref = jax.block_until_ready(edge_detect_ref(x))
    assert out.shape == (2, 4, 16, 16) and out.dtype == jnp.float32
    assert jnp.allclose(out, ref, atol=1e-5, rtol=1e-5)

    # bf16 input: DMA'd in native dtype, cast to f32 in-kernel, bf16 output.
    xb = jax.random.normal(k2, (2, 4, 16, 16), dtype=jnp.bfloat16)
    outb = jax.block_until_ready(edge_detect(xb))
    refb = jax.block_until_ready(edge_detect_ref(xb))
    assert outb.dtype == jnp.bfloat16
    assert jnp.allclose(outb.astype(jnp.float32), refb, atol=2e-2, rtol=2e-2)

    # Multi-step grid with a partial last block (odd channels, non-pow2 width).
    x2 = jax.random.normal(k3, (2, 9, 16, 24), dtype=jnp.float32)
    out2 = jax.block_until_ready(edge_detect(x2, target_block_bytes=8 * 1024))
    ref2 = jax.block_until_ready(edge_detect_ref(x2))
    assert jnp.allclose(out2, ref2, atol=1e-5, rtol=1e-5)

    print("KERNEL_OK")
</pallas_src>

<mosaic_0001>
module attributes {stable_mosaic.version = 11 : i64} {
  func.func @_edge_detect_kernel(%arg0: i32, %arg1: memref<8x256xf32, #tpu.memory_space<vmem>>, %arg2: memref<1x256xi32, #tpu.memory_space<vmem>>, %arg3: memref<8x256xf32, #tpu.memory_space<vmem>>) attributes {dimension_semantics = [#tpu.dimension_semantics<parallel>], iteration_bounds = array<i64: 1>, scalar_prefetch = 0 : i64, scratch_operands = 0 : i64, tpu.core_type = #tpu.core_type<tc>, window_params = [{transform_indices = @transform_0, window_bounds = array<i64: 8, 256>}, {pipeline_mode = #tpu.pipeline_mode<synchronous>, transform_indices = @transform_1, window_bounds = array<i64: 1, 256>}, {transform_indices = @transform_2, window_bounds = array<i64: 8, 256>}]} {
    %c0 = arith.constant 0 : index
    %c0_0 = arith.constant 0 : index
    %0 = vector.load %arg1[%c0, %c0_0] : memref<8x256xf32, #tpu.memory_space<vmem>>, vector<8x256xf32>
    %c0_1 = arith.constant 0 : index
    %c0_2 = arith.constant 0 : index
    %1 = vector.load %arg2[%c0_1, %c0_2] : memref<1x256xi32, #tpu.memory_space<vmem>>, vector<1x256xi32>
    %c1_i32 = arith.constant 1 : i32
    %2 = vector.broadcast %c1_i32 : i32 to vector<1x256xi32>
    %3 = arith.andi %1, %2 : vector<1x256xi32>
    %c0_i32 = arith.constant 0 : i32
    %4 = vector.broadcast %c0_i32 : i32 to vector<1x256xi32>
    %5 = arith.cmpi ne, %3, %4 : vector<1x256xi32>
    %c2_i32 = arith.constant 2 : i32
    %6 = vector.broadcast %c2_i32 : i32 to vector<1x256xi32>
    %7 = arith.andi %1, %6 : vector<1x256xi32>
    %c0_i32_3 = arith.constant 0 : i32
    %8 = vector.broadcast %c0_i32_3 : i32 to vector<1x256xi32>
    %9 = arith.cmpi ne, %7, %8 : vector<1x256xi32>
    %c4_i32 = arith.constant 4 : i32
    %10 = vector.broadcast %c4_i32 : i32 to vector<1x256xi32>
    %11 = arith.andi %1, %10 : vector<1x256xi32>
    %c0_i32_4 = arith.constant 0 : i32
    %12 = vector.broadcast %c0_i32_4 : i32 to vector<1x256xi32>
    %13 = arith.cmpi ne, %11, %12 : vector<1x256xi32>
    %c8_i32 = arith.constant 8 : i32
    %14 = vector.broadcast %c8_i32 : i32 to vector<1x256xi32>
    %15 = arith.andi %1, %14 : vector<1x256xi32>
    %c0_i32_5 = arith.constant 0 : i32
    %16 = vector.broadcast %c0_i32_5 : i32 to vector<1x256xi32>
    %17 = arith.cmpi ne, %15, %16 : vector<1x256xi32>
    %c255_i32 = arith.constant 255 : i32
    %18 = tpu.dynamic_rotate %0 by %c255_i32 dim 1 : vector<8x256xf32>, i32 -> vector<8x256xf32>
    %c1_i32_6 = arith.constant 1 : i32
    %19 = tpu.dynamic_rotate %0 by %c1_i32_6 dim 1 : vector<8x256xf32>, i32 -> vector<8x256xf32>
    %c240_i32 = arith.constant 240 : i32
    %20 = tpu.dynamic_rotate %0 by %c240_i32 dim 1 : vector<8x256xf32>, i32 -> vector<8x256xf32>
    %c16_i32 = arith.constant 16 : i32
    %21 = tpu.dynamic_rotate %0 by %c16_i32 dim 1 : vector<8x256xf32>, i32 -> vector<8x256xf32>
    %22 = vector.shape_cast %9 : vector<1x256xi1> to vector<1x256xi1>
    %23 = vector.broadcast %22 : vector<1x256xi1> to vector<8x256xi1>
    %24 = arith.select %23, %0, %18 : vector<8x256xi1>, vector<8x256xf32>
    %25 = vector.shape_cast %5 : vector<1x256xi1> to vector<1x256xi1>
    %26 = vector.broadcast %25 : vector<1x256xi1> to vector<8x256xi1>
    %27 = arith.select %26, %0, %19 : vector<8x256xi1>, vector<8x256xf32>
    %28 = arith.subf %24, %27 : vector<8x256xf32>
    %29 = vector.shape_cast %17 : vector<1x256xi1> to vector<1x256xi1>
    %30 = vector.broadcast %29 : vector<1x256xi1> to vector<8x256xi1>
    %31 = arith.select %30, %0, %20 : vector<8x256xi1>, vector<8x256xf32>
    %32 = vector.shape_cast %13 : vector<1x256xi1> to vector<1x256xi1>
    %33 = vector.broadcast %32 : vector<1x256xi1> to vector<8x256xi1>
    %34 = arith.select %33, %0, %21 : vector<8x256xi1>, vector<8x256xf32>
    %35 = arith.subf %31, %34 : vector<8x256xf32>
    %36 = arith.mulf %28, %28 : vector<8x256xf32>
    %37 = arith.mulf %35, %35 : vector<8x256xf32>
    %38 = arith.addf %36, %37 : vector<8x256xf32>
    %39 = math.sqrt %38 : vector<8x256xf32>
    %cst = arith.constant 5.000000e-01 : f32
    %40 = vector.broadcast %cst : f32 to vector<8x256xf32>
    %41 = arith.mulf %40, %39 : vector<8x256xf32>
    %c255_i32_7 = arith.constant 255 : i32
    %42 = tpu.dynamic_rotate %41 by %c255_i32_7 dim 1 : vector<8x256xf32>, i32 -> vector<8x256xf32>
    %cst_8 = arith.constant 0.000000e+00 : f32
    %43 = vector.shape_cast %9 : vector<1x256xi1> to vector<1x256xi1>
    %44 = vector.broadcast %43 : vector<1x256xi1> to vector<8x256xi1>
    %45 = vector.broadcast %cst_8 : f32 to vector<8x256xf32>
    %46 = arith.select %44, %45, %42 : vector<8x256xi1>, vector<8x256xf32>
    %c1_i32_9 = arith.constant 1 : i32
    %47 = tpu.dynamic_rotate %41 by %c1_i32_9 dim 1 : vector<8x256xf32>, i32 -> vector<8x256xf32>
    %cst_10 = arith.constant 0.000000e+00 : f32
    %48 = vector.shape_cast %5 : vector<1x256xi1> to vector<1x256xi1>
    %49 = vector.broadcast %48 : vector<1x256xi1> to vector<8x256xi1>
    %50 = vector.broadcast %cst_10 : f32 to vector<8x256xf32>
    %51 = arith.select %49, %50, %47 : vector<8x256xi1>, vector<8x256xf32>
    %52 = arith.maximumf %46, %51 : vector<8x256xf32>
    %53 = arith.maximumf %41, %52 : vector<8x256xf32>
    %c240_i32_11 = arith.constant 240 : i32
    %54 = tpu.dynamic_rotate %53 by %c240_i32_11 dim 1 : vector<8x256xf32>, i32 -> vector<8x256xf32>
    %cst_12 = arith.constant 0.000000e+00 : f32
    %55 = vector.shape_cast %17 : vector<1x256xi1> to vector<1x256xi1>
    %56 = vector.broadcast %55 : vector<1x256xi1> to vector<8x256xi1>
    %57 = vector.broadcast %cst_12 : f32 to vector<8x256xf32>
    %58 = arith.select %56, %57, %54 : vector<8x256xi1>, vector<8x256xf32>
    %c16_i32_13 = arith.constant 16 : i32
    %59 = tpu.dynamic_rotate %53 by %c16_i32_13 dim 1 : vector<8x256xf32>, i32 -> vector<8x256xf32>
    %cst_14 = arith.constant 0.000000e+00 : f32
    %60 = vector.shape_cast %13 : vector<1x256xi1> to vector<1x256xi1>
    %61 = vector.broadcast %60 : vector<1x256xi1> to vector<8x256xi1>
    %62 = vector.broadcast %cst_14 : f32 to vector<8x256xf32>
    %63 = arith.select %61, %62, %59 : vector<8x256xi1>, vector<8x256xf32>
    %64 = arith.maximumf %58, %63 : vector<8x256xf32>
    %65 = arith.maximumf %53, %64 : vector<8x256xf32>
    %c0_15 = arith.constant 0 : index
    %c0_16 = arith.constant 0 : index
    %66 = vector.load %arg3[%c0_15, %c0_16] : memref<8x256xf32, #tpu.memory_space<vmem>>, vector<8x256xf32>
    tpu.vector_store %arg3[%c0_15, %c0_16], %65 {strides = array<i32>} : memref<8x256xf32, #tpu.memory_space<vmem>>, vector<8x256xf32>,
    return
  }
  func.func @transform_0(%arg0: i32) -> (i32, i32) {
    %c0_i32 = arith.constant 0 : i32
    %c0_i32_0 = arith.constant 0 : i32
    return %arg0, %c0_i32 : i32, i32
  }
  func.func @transform_1(%arg0: i32) -> (i32, i32) {
    %c0_i32 = arith.constant 0 : i32
    %c0_i32_0 = arith.constant 0 : i32
    %c0_i32_1 = arith.constant 0 : i32
    return %c0_i32, %c0_i32_0 : i32, i32
  }
  func.func @transform_2(%arg0: i32) -> (i32, i32) {
    %c0_i32 = arith.constant 0 : i32
    %c0_i32_0 = arith.constant 0 : i32
    return %arg0, %c0_i32 : i32, i32
  }
}

</mosaic_0001>

<llo_original>
// kernel: tpu_custom_call.1
$region0: #{tpu_custom_call.1}
  #allocation0 [shape = 'u32[]', space=smem, size = 0x4, offset = 0x4, fixed_abs, tag = 'smem constant byte address 0x4 - core index']
  #allocation1 [shape = 'u32[144,128]{1,0:T(1,128)}', space=vmem, size = 0x12000, scoped, tag = 'internal scratch']
  %s0 = inlined_call_operand.hbm [shape: f32[8,256], index: 0, kind: input, shape index: {}]
  %s1 = inlined_call_operand.vmem [shape: s32[1,256], index: 1, kind: input, shape index: {}]
  %s2 = inlined_call_operand.hbm [shape: f32[8,256], index: 2, kind: output, shape index: {}]
  %s3 = sld [smem:[#allocation0]]
  $region22: #{tpu_custom_call.1} parent=0
    _
  %s5 = ssub.s32 1, %s3
  %s6 = scalar_select 0, %s5, %s3
  $region1: #{tpu_custom_call.1} parent=0
    #allocation2 [shape = 'u8[8192]{0}', space=vmem, size = 0x2000, scoped, tag = 'input window, operand 0, single buffered']
    #allocation3 [shape = 's32[1]{0}', space=sflag, size = 0x4, scoped, tag = 'scoped memory for tpu_custom_call.1']
    #allocation4 [shape = 's32[1]{0}', space=sflag, size = 0x4, scoped, tag = 'scoped memory for tpu_custom_call.1']
    #allocation5 [shape = 'u8[8192]{0}', space=vmem, size = 0x2000, scoped, tag = 'output window, operand 0, single buffered']
    %7 = vsyncpa [#allocation3], 0
    %8 = vsyncpa [#allocation4], 0
    // Predicated region
    $region2: #{tpu_custom_call.1} parent=1 // pred_check
      _
    $region3: #{tpu_custom_call.1} parent=1 // pred_check_branch
      %10 = sbr.rel (0) target = $region5
    $region4: #{tpu_custom_call.1} parent=1 // pred_region
      %s12 = ssub.s32 256, 256
      %13 = vsyncadd [#allocation3], %s12
      %s15 = sshll.u32 [#allocation2], 4
      %s16 = int_to_ptr.vmem [resolvable:$true] %s15
      %18 = dma.hbm_to_vmem [thread:$0]  %s0, 256, %s16, [#allocation3]
    $region5: #{tpu_custom_call.1} parent=1 // pred_fallthru
      _
    // Predicated region
    $region6: #{tpu_custom_call.1} parent=1 // pred_check
      _
    $region7: #{tpu_custom_call.1} parent=1 // pred_check_branch
      %20 = sbr.rel (0) target = $region9
    $region8: #{tpu_custom_call.1} parent=1 // pred_region
      _
    $region9: #{tpu_custom_call.1} parent=1 // pred_fallthru
      _
    // Predicated region
    $region10: #{tpu_custom_call.1} parent=1 // pred_check
      _
    $region11: #{tpu_custom_call.1} parent=1 // pred_check_branch
      %22 = sbr.rel (0) target = $region13
    $region12: #{tpu_custom_call.1} parent=1 // pred_region
      %23 = dma.done [#allocation3], 256
    $region13: #{tpu_custom_call.1} parent=1 // pred_fallthru
      _
    %v24 = vld [vmem:[#allocation2] sm:$0xff]
    %v25 = vld [vmem:[#allocation2 + $0x8] sm:$0xff]
    %v26 = vld [vmem:[%s1] sm:$0x3]
    %v27 = vand.u32 %v26, 1
    %vm28 = vcmp.ne.s32.totalorder %v27, 0
    %v29 = vand.u32 %v26, 2
    %vm30 = vcmp.ne.s32.totalorder %v29, 0
    %v31 = vand.u32 %v26, 4
    %vm32 = vcmp.ne.s32.totalorder %v31, 0
    %v33 = vand.u32 %v26, 8
    %vm34 = vcmp.ne.s32.totalorder %v33, 0
    %35 = vrot.lane.b32.xlu0 %v24, 127
    %v36 = vpop.permute.xlu0 %35
    %37 = vrot.lane.b32.xlu0 %v25, 127
    %v38 = vpop.permute.xlu0 %37
    %v39 = vlaneseq
    %v40 = vand.u32 %v39, 127
    %vm41 = vcmp.lt.s32.totalorder %v40, 127
    %v42 = vsel %vm41, %v36, %v38
    %v43 = vsel %vm41, %v38, %v36
    %44 = vrot.lane.b32.xlu0 %v24, 1
    %v45 = vpop.permute.xlu0 %44
    %46 = vrot.lane.b32.xlu0 %v25, 1
    %v47 = vpop.permute.xlu0 %46
    %vm48 = vcmp.lt.s32.totalorder %v40, 1
    %v49 = vsel %vm48, %v45, %v47
    %v50 = vsel %vm48, %v47, %v45
    %51 = vrot.lane.b32.xlu0 %v24, 112
    %v52 = vpop.permute.xlu0 %51
    %53 = vrot.lane.b32.xlu0 %v25, 112
    %v54 = vpop.permute.xlu0 %53
    %vm55 = vcmp.lt.s32.totalorder %v40, 112
    %v56 = vsel %vm55, %v52, %v54
    %v57 = vsel %vm55, %v54, %v52
    %58 = vrot.lane.b32.xlu0 %v24, 16
    %v59 = vpop.permute.xlu0 %58
    %60 = vrot.lane.b32.xlu0 %v25, 16
    %v61 = vpop.permute.xlu0 %60
    %vm62 = vcmp.lt.s32.totalorder %v40, 16
    %v63 = vsel %vm62, %v59, %v61
    %v64 = vsel %vm62, %v61, %v59
    %v65 = vsel %vm30, 1, 0
    %v66 = vlaneseq
    %v67 = vshrl.u32 %v66, 7
    %v68 = vsub.s32 0, %v67
    %v69 = vrot.slane %v65, %v68
    %v70 = vlaneseq
    %v71 = vshrl.u32 %v70, 7
    %v72 = vsub.s32 1, %v71
    %v73 = vrot.slane %v65, %v72
    %vm74 = vcmp.eq.s32.totalorder %v69, 1
    %vm75 = vcmp.eq.s32.totalorder %v73, 1
    %v76 = vsel %vm74, %v24, %v42
    %v77 = vsel %vm75, %v25, %v43
    %v78 = vsel %vm28, 1, 0
    %v79 = vlaneseq
    %v80 = vshrl.u32 %v79, 7
    %v81 = vsub.s32 0, %v80
    %v82 = vrot.slane %v78, %v81
    %v83 = vlaneseq
    %v84 = vshrl.u32 %v83, 7
    %v85 = vsub.s32 1, %v84
    %v86 = vrot.slane %v78, %v85
    %vm87 = vcmp.eq.s32.totalorder %v82, 1
    %vm88 = vcmp.eq.s32.totalorder %v86, 1
    %v89 = vsel %vm87, %v24, %v50
    %v90 = vsel %vm88, %v25, %v49
    %v91 = vsub.f32 %v76, %v89
    %v92 = vsub.f32 %v77, %v90
    %v93 = vsel %vm34, 1, 0
    %v94 = vlaneseq
    %v95 = vshrl.u32 %v94, 7
    %v96 = vsub.s32 0, %v95
    %v97 = vrot.slane %v93, %v96
    %v98 = vlaneseq
    %v99 = vshrl.u32 %v98, 7
    %v100 = vsub.s32 1, %v99
    %v101 = vrot.slane %v93, %v100
    %vm102 = vcmp.eq.s32.totalorder %v97, 1
    %vm103 = vcmp.eq.s32.totalorder %v101, 1
    %v104 = vsel %vm102, %v24, %v56
    %v105 = vsel %vm103, %v25, %v57
    %v106 = vsel %vm32, 1, 0
    %v107 = vlaneseq
    %v108 = vshrl.u32 %v107, 7
    %v109 = vsub.s32 0, %v108
    %v110 = vrot.slane %v106, %v109
    %v111 = vlaneseq
    %v112 = vshrl.u32 %v111, 7
    %v113 = vsub.s32 1, %v112
    %v114 = vrot.slane %v106, %v113
    %vm115 = vcmp.eq.s32.totalorder %v110, 1
    %vm116 = vcmp.eq.s32.totalorder %v114, 1
    %v117 = vsel %vm115, %v24, %v64
    %v118 = vsel %vm116, %v25, %v63
    %v119 = vsub.f32 %v104, %v117
    %v120 = vsub.f32 %v105, %v118
    %v121 = vmul.f32 %v91, %v91
    %v122 = vmul.f32 %v92, %v92
    %v123 = vmul.f32 %v119, %v119
    %v124 = vmul.f32 %v120, %v120
    %v125 = vadd.f32 %v121, %v123
    %v126 = vadd.f32 %v122, %v124
    %v127 = vrsqrt.pop %v125
    %v128 = vmul.f32 %v125, %v127
    %vm129 = vcmp.eq.f32.partialorder %v125, inf
    %v130 = vsel %vm129, %v125, %v128
    %vm131 = vcmp.eq.f32.partialorder %v125, 0.0
    %v132 = vand.u32 %v125, 2147483648
    %v133 = vsel %vm131, %v132, %v130
    %v134 = vrsqrt.pop %v126
    %v135 = vmul.f32 %v126, %v134
    %vm136 = vcmp.eq.f32.partialorder %v126, inf
    %v137 = vsel %vm136, %v126, %v135
    %vm138 = vcmp.eq.f32.partialorder %v126, 0.0
    %v139 = vand.u32 %v126, 2147483648
    %v140 = vsel %vm138, %v139, %v137
    %v141 = vmul.f32 %v133, 0.5
    %v142 = vmul.f32 %v140, 0.5
    %143 = vrot.lane.b32.xlu0 %v141, 127
    %v144 = vpop.permute.xlu0 %143
    %145 = vrot.lane.b32.xlu0 %v142, 127
    %v146 = vpop.permute.xlu0 %145
    %v147 = vsel %vm41, %v144, %v146
    %v148 = vsel %vm41, %v146, %v144
    %v149 = vsel %vm74, 0.0, %v147
    %v150 = vsel %vm75, 0.0, %v148
    %151 = vrot.lane.b32.xlu0 %v141, 1
    %v152 = vpop.permute.xlu0 %151
    %153 = vrot.lane.b32.xlu0 %v142, 1
    %v154 = vpop.permute.xlu0 %153
    %v155 = vsel %vm48, %v152, %v154
    %v156 = vsel %vm48, %v154, %v152
    %v157 = vsel %vm87, 0.0, %v156
    %v158 = vsel %vm88, 0.0, %v155
    %v159 = vmax.f32 %v149, %v157
    %v160 = vmax.f32 %v150, %v158
    %v161 = vmax.f32 %v141, %v159
    %v162 = vmax.f32 %v142, %v160
    %163 = vrot.lane.b32.xlu0 %v161, 112
    %v164 = vpop.permute.xlu0 %163
    %165 = vrot.lane.b32.xlu0 %v162, 112
    %v166 = vpop.permute.xlu0 %165
    %v167 = vsel %vm55, %v164, %v166
    %v168 = vsel %vm55, %v166, %v164
    %v169 = vsel %vm102, 0.0, %v167
    %v170 = vsel %vm103, 0.0, %v168
    %171 = vrot.lane.b32.xlu0 %v161, 16
    %v172 = vpop.permute.xlu0 %171
    %173 = vrot.lane.b32.xlu0 %v162, 16
    %v174 = vpop.permute.xlu0 %173
    %v175 = vsel %vm62, %v172, %v174
    %v176 = vsel %vm62, %v174, %v172
    %v177 = vsel %vm115, 0.0, %v176
    %v178 = vsel %vm116, 0.0, %v175
    %v179 = vmax.f32 %v169, %v177
    %v180 = vmax.f32 %v170, %v178
    %v181 = vmax.f32 %v161, %v179
    %v182 = vmax.f32 %v162, %v180
    %183 = vst [vmem:[#allocation5] sm:$0xff] %v181
    %184 = vst [vmem:[#allocation5 + $0x8] sm:$0xff] %v182
    // Predicated region
    $region14: #{tpu_custom_call.1} parent=1 // pred_check
      _
    $region15: #{tpu_custom_call.1} parent=1 // pred_check_branch
      %186 = sbr.rel (0) target = $region17
    $region16: #{tpu_custom_call.1} parent=1 // pred_region
      %s188 = ssub.s32 256, 256
      %189 = vsyncadd [#allocation4], %s188
      %s191 = sshll.u32 [#allocation5], 4
      %s192 = int_to_ptr.vmem [resolvable:$true] %s191
      %194 = dma.vmem_to_hbm [thread:$0]  %s192, 256, %s2, [#allocation4]
    $region17: #{tpu_custom_call.1} parent=1 // pred_fallthru
      _
    // Predicated region
    $region18: #{tpu_custom_call.1} parent=1 // pred_check
      _
    $region19: #{tpu_custom_call.1} parent=1 // pred_check_branch
      %196 = sbr.rel (0) target = $region21
    $region20: #{tpu_custom_call.1} parent=1 // pred_region
      %197 = dma.done [#allocation4], 256
    $region21: #{tpu_custom_call.1} parent=1 // pred_fallthru
      _
    %198 = vsyncpa [#allocation3], 1
    %199 = vsyncpa [#allocation4], 1

</llo_original>
